<compile_context>
chip_gen: v6e
topology: v6e:2x2x1
jax: 0.10.0
libtpu: 0.0.40
codegen_flags: <defaults>
</compile_context>

<pallas_src>
import jax
import jax.numpy as jnp
from jax.experimental import pallas as pl
from jax.experimental.pallas import tpu as pltpu


def _round_up(n, m):
    return (n + m - 1) // m * m


def _rnn_seq_kernel(x_ref, state0_ref, w_ref, b_ref, ys_ref, state_ref):
    """One LSTM time step per grid iteration; weights/state VMEM-resident."""
    H = state0_ref.shape[1]
    IN = x_ref.shape[-1]

    t = pl.program_id(0)

    @pl.when(t == 0)
    def _init():
        # Load the initial (h0, c0) into the resident state block once.
        state_ref[...] = state0_ref[...]

    h = state_ref[0:1, :]                    # (1, H)  f32, carried in VMEM
    c = state_ref[1:2, :]                    # (1, H)  f32
    x = x_ref[0]                             # (1, IN) f32 (per-step DMA slice)

    wdt = w_ref.dtype
    # Fused gate pre-activations: x uses the folded (inp -> LSTM-ih) weight,
    # h uses w_hh.  Two accumulating MXU dots, f32 accumulation.  Lanes >= 4H
    # of the padded buffers are zeros and never read back.
    gates = (jnp.dot(x.astype(wdt), w_ref[0:IN, :],
                     preferred_element_type=jnp.float32)
             + jnp.dot(h.astype(wdt), w_ref[IN:IN + H, :],
                       preferred_element_type=jnp.float32)
             + b_ref[0:1, :])                                    # (1, lanes)

    # Two full-vreg EUP passes.  PyTorch gate order along lanes: [i | f | g | o].
    # (At H=32 all four gates share one 128-lane vreg, so the 32-lane gate
    #  alignment cannot be removed by offline column permutation; the shifts
    #  land on the otherwise-idle XLU slot.)  All activation math stays f32.
    sig = jax.nn.sigmoid(gates)
    tnh = jnp.tanh(gates)
    i_g = sig[:, 0 * H:1 * H]
    f_g = sig[:, 1 * H:2 * H]
    g_g = tnh[:, 2 * H:3 * H]
    o_g = sig[:, 3 * H:4 * H]

    c_new = f_g * c + i_g * g_g                                  # (1, H)
    h_new = o_g * jnp.tanh(c_new)                                # (1, H)

    # out: Linear(hidden, output_size), zero-padded to the full lane width so
    # the per-step store is lane-dense (unmasked).
    y_pad = (jnp.dot(h_new.astype(wdt), w_ref[IN + H:, :],
                     preferred_element_type=jnp.float32)
             + b_ref[1:2, :])                                    # (1, lanes)
    ys_ref[0] = y_pad

    # Carry (h, c) in the VMEM-resident output block; written back to HBM
    # only once, after the last step.
    state_ref[0:1, :] = h_new
    state_ref[1:2, :] = c_new


def prepare_params(p, weights_dtype=jnp.float32):
    """Offline algebraic folding + packing (run once, not per forward call).

    Folds the `inp` Linear into the LSTM input projection (always in f32,
    BEFORE any cast), stacks [W_xg ; W_hh ; W_out] into one lane-padded
    VMEM-resident weight slab, and packs both bias rows into a second buffer.
    Use weights_dtype=jnp.bfloat16 on v6e/v7x for the native MXU path.
    """
    f32 = jnp.float32
    w_inp = p["w_inp"].astype(f32)
    w_ih = p["w_ih"].astype(f32)
    w_hh = p["w_hh"].astype(f32)
    w_out = p["w_out"].astype(f32)
    In, H = w_inp.shape
    O = w_out.shape[1]
    assert In % 8 == 0 and H % 8 == 0, "row-slab boundaries must be sublane-aligned"
    lanes = max(4 * H, _round_up(O, 128))          # packed lane width (128 here)

    w_xg = w_inp @ w_ih                                              # (In, 4H)
    b_gates = p["b_inp"].astype(f32) @ w_ih + p["b_ih"] + p["b_hh"]  # (1, 4H)

    def pad_lanes(a):
        return jnp.pad(a, ((0, 0), (0, lanes - a.shape[1])))

    w_packed = jnp.concatenate(
        [pad_lanes(w_xg), pad_lanes(w_hh), pad_lanes(w_out)],
        axis=0).astype(weights_dtype)                       # (In + 2H, lanes)
    b_packed = jnp.concatenate(
        [pad_lanes(b_gates), pad_lanes(p["b_out"].astype(f32))],
        axis=0)                                             # (2, lanes) f32

    return {"w_packed": w_packed, "b_packed": b_packed, "out_features": int(O)}


@jax.jit
def _rnn_seq_call(xs, state0, w_packed, b_packed):
    T, _, IN = xs.shape
    H = state0.shape[1]
    lanes = w_packed.shape[1]
    assert w_packed.shape[0] == IN + 2 * H

    grid_spec = pltpu.PrefetchScalarGridSpec(
        num_scalar_prefetch=0,
        grid=(T,),
        in_specs=[
            # Per-step (1, IN) activation slice: the only per-step DMA.
            pl.BlockSpec((1, 1, IN), lambda t: (t, 0, 0)),
            # Constant index maps -> fetched once, VMEM-resident for all T steps.
            pl.BlockSpec((2, H), lambda t: (0, 0)),
            pl.BlockSpec((IN + 2 * H, lanes), lambda t: (0, 0)),
            pl.BlockSpec((2, lanes), lambda t: (0, 0)),
        ],
        out_specs=[
            # Lane-dense per-step y row.
            pl.BlockSpec((1, 1, lanes), lambda t: (t, 0, 0)),
            # Resident carried state, written back once at the end.
            pl.BlockSpec((2, H), lambda t: (0, 0)),
        ],
    )
    return pl.pallas_call(
        _rnn_seq_kernel,
        out_shape=(jax.ShapeDtypeStruct((T, 1, lanes), jnp.float32),
                   jax.ShapeDtypeStruct((2, H), jnp.float32)),
        grid_spec=grid_spec,
        input_output_aliases={1: 1},          # carried (h, c) updated in place
        compiler_params=pltpu.CompilerParams(
            dimension_semantics=("arbitrary",)),  # time is a true recurrence
    )(xs, state0, w_packed, b_packed)


def rnn_forward_seq(xs, prepped, h0, c0):
    """Runs T successive forward() calls of the PyTorch module in one kernel."""
    T = xs.shape[0]
    H = h0.shape[-1]
    IN = prepped["w_packed"].shape[0] - 2 * H
    xs3 = jnp.reshape(xs, (T, 1, -1)).astype(jnp.float32)
    assert xs3.shape[-1] == IN, (xs3.shape, IN)
    state0 = jnp.concatenate([h0, c0], axis=0).astype(jnp.float32)   # (2, H)
    ys_pad, state = _rnn_seq_call(xs3, state0,
                                  prepped["w_packed"], prepped["b_packed"])
    O = prepped["out_features"]
    ys = ys_pad[:, 0, :O]
    return ys, (state[0:1, :], state[1:2, :])


def rnn_forward(x, prepped, h0, c0):
    """One forward() call of the module (sequence of length 1)."""
    y, (h, c) = rnn_forward_seq(x[None], prepped, h0, c0)
    return y, (h, c)


def init_params(key, input_size, hidden_size, output_size):
    """Deterministic parameter init (uniform +-1/sqrt(fan_in), like PyTorch)."""
    ks = jax.random.split(key, 8)

    def u(k, shape, fan_in):
        bound = 1.0 / jnp.sqrt(fan_in)
        return jax.random.uniform(k, shape, jnp.float32, -bound, bound)

    # Weights stored already transposed: (in_features, out_features).
    return {
        "w_inp": u(ks[0], (input_size, hidden_size), input_size),
        "b_inp": u(ks[1], (1, hidden_size), input_size),
        "w_ih":  u(ks[2], (hidden_size, 4 * hidden_size), hidden_size),
        "b_ih":  u(ks[3], (1, 4 * hidden_size), hidden_size),
        "w_hh":  u(ks[4], (hidden_size, 4 * hidden_size), hidden_size),
        "b_hh":  u(ks[5], (1, 4 * hidden_size), hidden_size),
        "w_out": u(ks[6], (hidden_size, output_size), hidden_size),
        "b_out": u(ks[7], (1, output_size), hidden_size),
    }


def _reference_forward_seq(xs, p, h0, c0):
    """Pure-JAX reference: T successive unfused forward() calls."""
    H = h0.shape[-1]
    h, c = h0, c0
    ys = []
    for t in range(xs.shape[0]):
        z = xs[t].reshape(1, -1) @ p["w_inp"] + p["b_inp"]
        gates = z @ p["w_ih"] + p["b_ih"] + h @ p["w_hh"] + p["b_hh"]
        i = jax.nn.sigmoid(gates[:, 0 * H:1 * H])
        f = jax.nn.sigmoid(gates[:, 1 * H:2 * H])
        g = jnp.tanh(gates[:, 2 * H:3 * H])
        o = jax.nn.sigmoid(gates[:, 3 * H:4 * H])
        c = f * c + i * g
        h = o * jnp.tanh(c)
        ys.append(h @ p["w_out"] + p["b_out"])
    return jnp.concatenate(ys, axis=0), h, c


if __name__ == "__main__":
    HIDDEN, INPUT_SIZE, OUTPUT_SIZE, T = 32, 64, 16, 8

    key = jax.random.PRNGKey(0)
    k_x, k_p = jax.random.split(key)

    # Each forward() call gets an arbitrary-shaped (8, 8) input; the module
    # flattens it to (1, INPUT_SIZE).  T successive calls share carried state.
    xs = jax.random.normal(k_x, (T, 8, 8), jnp.float32)     # 8*8 == INPUT_SIZE

    params = init_params(k_p, INPUT_SIZE, HIDDEN, OUTPUT_SIZE)

    # self.hidden = init_hidden(): zero initial LSTM state (intended (1, H)).
    h0 = jnp.zeros((1, HIDDEN), jnp.float32)
    c0 = jnp.zeros((1, HIDDEN), jnp.float32)

    ys_ref, h_ref, c_ref = _reference_forward_seq(xs, params, h0, c0)

    # --- f32-weight kernel: tight check against the unfused reference. -----
    prepped = prepare_params(params, weights_dtype=jnp.float32)
    ys, (h_n, c_n) = rnn_forward_seq(xs, prepped, h0, c0)
    jax.block_until_ready((ys, h_n, c_n))
    assert ys.shape == (T, OUTPUT_SIZE)
    assert jnp.allclose(ys, ys_ref, atol=1e-4, rtol=1e-4)
    assert jnp.allclose(h_n, h_ref, atol=1e-4, rtol=1e-4)
    assert jnp.allclose(c_n, c_ref, atol=1e-4, rtol=1e-4)

    # --- single forward() call (module API parity). -------------------------
    y1, (h1, c1) = rnn_forward(xs[0], prepped, h0, c0)
    jax.block_until_ready(y1)
    assert y1.shape == (1, OUTPUT_SIZE)
    assert jnp.allclose(y1, ys_ref[0:1], atol=1e-4, rtol=1e-4)

    # --- bf16 resident weights (v6e/v7x MXU fast path); gate math stays f32.
    prepped_bf16 = prepare_params(params, weights_dtype=jnp.bfloat16)
    ys_b, (h_b, c_b) = rnn_forward_seq(xs, prepped_bf16, h0, c0)
    jax.block_until_ready(ys_b)
    assert jnp.allclose(ys_b, ys_ref, atol=2e-2, rtol=2e-2)

    print("KERNEL_OK")
</pallas_src>

<mosaic_0001>
module attributes {stable_mosaic.version = 11 : i64} {
  func.func @_rnn_seq_kernel(%arg0: i32, %arg1: memref<1x1x64xf32, #tpu.memory_space<vmem>>, %arg2: memref<2x32xf32, #tpu.memory_space<vmem>>, %arg3: memref<128x128xf32, #tpu.memory_space<vmem>>, %arg4: memref<2x128xf32, #tpu.memory_space<vmem>>, %arg5: memref<1x1x128xf32, #tpu.memory_space<vmem>>, %arg6: memref<2x32xf32, #tpu.memory_space<vmem>>) attributes {dimension_semantics = [#tpu.dimension_semantics<arbitrary>], iteration_bounds = array<i64: 8>, scalar_prefetch = 0 : i64, scratch_operands = 0 : i64, tpu.core_type = #tpu.core_type<tc>, window_params = [{transform_indices = @transform_0, window_bounds = array<i64: 1, 1, 64>}, {pipeline_mode = #tpu.pipeline_mode<synchronous>, transform_indices = @transform_1, window_bounds = array<i64: 2, 32>}, {pipeline_mode = #tpu.pipeline_mode<synchronous>, transform_indices = @transform_2, window_bounds = array<i64: 128, 128>}, {pipeline_mode = #tpu.pipeline_mode<synchronous>, transform_indices = @transform_3, window_bounds = array<i64: 2, 128>}, {transform_indices = @transform_4, window_bounds = array<i64: 1, 1, 128>}, {pipeline_mode = #tpu.pipeline_mode<synchronous>, transform_indices = @transform_5, window_bounds = array<i64: 2, 32>}]} {
    %c0_i32 = arith.constant 0 : i32
    %0 = arith.cmpi eq, %arg0, %c0_i32 : i32
    %1 = arith.extui %0 : i1 to i32
    %c0_i32_0 = arith.constant 0 : i32
    %2 = arith.cmpi ne, %1, %c0_i32_0 : i32
    scf.if %2 {
      %c0_24 = arith.constant 0 : index
      %c0_25 = arith.constant 0 : index
      %38 = vector.load %arg2[%c0_24, %c0_25] : memref<2x32xf32, #tpu.memory_space<vmem>>, vector<2x32xf32>
      %c0_26 = arith.constant 0 : index
      %c0_27 = arith.constant 0 : index
      %39 = vector.load %arg6[%c0_26, %c0_27] : memref<2x32xf32, #tpu.memory_space<vmem>>, vector<2x32xf32>
      tpu.vector_store %arg6[%c0_26, %c0_27], %38 {strides = array<i32>} : memref<2x32xf32, #tpu.memory_space<vmem>>, vector<2x32xf32>,
    } else {
    }
    %c0 = arith.constant 0 : index
    %c0_1 = arith.constant 0 : index
    %3 = vector.load %arg6[%c0, %c0_1] : memref<2x32xf32, #tpu.memory_space<vmem>>, vector<1x32xf32>
    %c1 = arith.constant 1 : index
    %c0_2 = arith.constant 0 : index
    %4 = vector.load %arg6[%c1, %c0_2] : memref<2x32xf32, #tpu.memory_space<vmem>>, vector<1x32xf32>
    %c0_3 = arith.constant 0 : index
    %c0_4 = arith.constant 0 : index
    %c0_5 = arith.constant 0 : index
    %5 = vector.load %arg1[%c0_3, %c0_4, %c0_5] : memref<1x1x64xf32, #tpu.memory_space<vmem>>, vector<1x1x64xf32>
    %6 = vector.shape_cast %5 : vector<1x1x64xf32> to vector<1x64xf32>
    %c0_6 = arith.constant 0 : index
    %c0_7 = arith.constant 0 : index
    %7 = vector.load %arg3[%c0_6, %c0_7] : memref<128x128xf32, #tpu.memory_space<vmem>>, vector<64x128xf32>
    %cst = arith.constant dense<0.000000e+00> : vector<1x128xf32>
    %8 = tpu.matmul %6, %7, %cst {dimension_numbers = #tpu.dot_dimension_numbers<[1], [0], [0], [1], [0, 0, 1, 1], [], []>} : vector<1x64xf32>, vector<64x128xf32>, vector<1x128xf32> -> vector<1x128xf32>
    %c64 = arith.constant 64 : index
    %c0_8 = arith.constant 0 : index
    %9 = vector.load %arg3[%c64, %c0_8] : memref<128x128xf32, #tpu.memory_space<vmem>>, vector<32x128xf32>
    %cst_9 = arith.constant dense<0.000000e+00> : vector<1x128xf32>
    %10 = tpu.matmul %3, %9, %cst_9 {dimension_numbers = #tpu.dot_dimension_numbers<[1], [0], [0], [1], [0, 0, 1, 1], [], []>} : vector<1x32xf32>, vector<32x128xf32>, vector<1x128xf32> -> vector<1x128xf32>
    %11 = arith.addf %8, %10 : vector<1x128xf32>
    %c0_10 = arith.constant 0 : index
    %c0_11 = arith.constant 0 : index
    %12 = vector.load %arg4[%c0_10, %c0_11] : memref<2x128xf32, #tpu.memory_space<vmem>>, vector<1x128xf32>
    %13 = arith.addf %11, %12 : vector<1x128xf32>
    %14 = arith.negf %13 : vector<1x128xf32>
    %15 = math.exp %14 : vector<1x128xf32>
    %cst_12 = arith.constant 1.000000e+00 : f32
    %16 = vector.broadcast %cst_12 : f32 to vector<1x128xf32>
    %17 = arith.addf %16, %15 : vector<1x128xf32>
    %18 = arith.divf %16, %17 : vector<1x128xf32>
    %19 = math.tanh %13 : vector<1x128xf32>
    %20 = vector.extract_strided_slice %18 {offsets = [0, 0], sizes = [1, 32], strides = [1, 1]} : vector<1x128xf32> to vector<1x32xf32>
    %21 = vector.extract_strided_slice %18 {offsets = [0, 32], sizes = [1, 32], strides = [1, 1]} : vector<1x128xf32> to vector<1x32xf32>
    %22 = vector.extract_strided_slice %19 {offsets = [0, 64], sizes = [1, 32], strides = [1, 1]} : vector<1x128xf32> to vector<1x32xf32>
    %23 = vector.extract_strided_slice %18 {offsets = [0, 96], sizes = [1, 32], strides = [1, 1]} : vector<1x128xf32> to vector<1x32xf32>
    %24 = arith.mulf %21, %4 : vector<1x32xf32>
    %25 = arith.mulf %20, %22 : vector<1x32xf32>
    %26 = arith.addf %24, %25 : vector<1x32xf32>
    %27 = math.tanh %26 : vector<1x32xf32>
    %28 = arith.mulf %23, %27 : vector<1x32xf32>
    %c96 = arith.constant 96 : index
    %c0_13 = arith.constant 0 : index
    %29 = vector.load %arg3[%c96, %c0_13] : memref<128x128xf32, #tpu.memory_space<vmem>>, vector<32x128xf32>
    %cst_14 = arith.constant dense<0.000000e+00> : vector<1x128xf32>
    %30 = tpu.matmul %28, %29, %cst_14 {dimension_numbers = #tpu.dot_dimension_numbers<[1], [0], [0], [1], [0, 0, 1, 1], [], []>} : vector<1x32xf32>, vector<32x128xf32>, vector<1x128xf32> -> vector<1x128xf32>
    %c1_15 = arith.constant 1 : index
    %c0_16 = arith.constant 0 : index
    %31 = vector.load %arg4[%c1_15, %c0_16] : memref<2x128xf32, #tpu.memory_space<vmem>>, vector<1x128xf32>
    %32 = arith.addf %30, %31 : vector<1x128xf32>
    %c0_17 = arith.constant 0 : index
    %c0_18 = arith.constant 0 : index
    %c0_19 = arith.constant 0 : index
    %33 = vector.load %arg5[%c0_17, %c0_18, %c0_19] : memref<1x1x128xf32, #tpu.memory_space<vmem>>, vector<1x1x128xf32>
    %34 = vector.shape_cast %33 : vector<1x1x128xf32> to vector<1x128xf32>
    %35 = vector.shape_cast %32 : vector<1x128xf32> to vector<1x1x128xf32>
    tpu.vector_store %arg5[%c0_17, %c0_18, %c0_19], %35 {strides = array<i32>} : memref<1x1x128xf32, #tpu.memory_space<vmem>>, vector<1x1x128xf32>,
    %c0_20 = arith.constant 0 : index
    %c0_21 = arith.constant 0 : index
    %36 = vector.load %arg6[%c0_20, %c0_21] : memref<2x32xf32, #tpu.memory_space<vmem>>, vector<1x32xf32>
    tpu.vector_store %arg6[%c0_20, %c0_21], %28 {strides = array<i32>} : memref<2x32xf32, #tpu.memory_space<vmem>>, vector<1x32xf32>,
    %c1_22 = arith.constant 1 : index
    %c0_23 = arith.constant 0 : index
    %37 = vector.load %arg6[%c1_22, %c0_23] : memref<2x32xf32, #tpu.memory_space<vmem>>, vector<1x32xf32>
    tpu.vector_store %arg6[%c1_22, %c0_23], %26 {strides = array<i32>} : memref<2x32xf32, #tpu.memory_space<vmem>>, vector<1x32xf32>,
    return
  }
  func.func @transform_0(%arg0: i32) -> (i32, i32, i32) {
    %c0_i32 = arith.constant 0 : i32
    %c0_i32_0 = arith.constant 0 : i32
    %c0_i32_1 = arith.constant 0 : i32
    return %arg0, %c0_i32, %c0_i32_0 : i32, i32, i32
  }
  func.func @transform_1(%arg0: i32) -> (i32, i32) {
    %c0_i32 = arith.constant 0 : i32
    %c0_i32_0 = arith.constant 0 : i32
    %c0_i32_1 = arith.constant 0 : i32
    return %c0_i32, %c0_i32_0 : i32, i32
  }
  func.func @transform_2(%arg0: i32) -> (i32, i32) {
    %c0_i32 = arith.constant 0 : i32
    %c0_i32_0 = arith.constant 0 : i32
    %c0_i32_1 = arith.constant 0 : i32
    return %c0_i32, %c0_i32_0 : i32, i32
  }
  func.func @transform_3(%arg0: i32) -> (i32, i32) {
    %c0_i32 = arith.constant 0 : i32
    %c0_i32_0 = arith.constant 0 : i32
    %c0_i32_1 = arith.constant 0 : i32
    return %c0_i32, %c0_i32_0 : i32, i32
  }
  func.func @transform_4(%arg0: i32) -> (i32, i32, i32) {
    %c0_i32 = arith.constant 0 : i32
    %c0_i32_0 = arith.constant 0 : i32
    %c0_i32_1 = arith.constant 0 : i32
    return %arg0, %c0_i32, %c0_i32_0 : i32, i32, i32
  }
  func.func @transform_5(%arg0: i32) -> (i32, i32) {
    %c0_i32 = arith.constant 0 : i32
    %c0_i32_0 = arith.constant 0 : i32
    %c0_i32_1 = arith.constant 0 : i32
    return %c0_i32, %c0_i32_0 : i32, i32
  }
}

</mosaic_0001>

<llo_original>
// kernel: _rnn_seq_call.1
$region0: #{_rnn_seq_call.1}
  #allocation0 [shape = 'u32[]', space=smem, size = 0x4, offset = 0x4, fixed_abs, tag = 'smem constant byte address 0x4 - core index']
  #allocation1 [shape = 'u32[144,128]{1,0:T(1,128)}', space=vmem, size = 0x12000, scoped, tag = 'internal scratch']
  %s0 = inlined_call_operand.vmem [shape: f32[8,1,64], index: 0, kind: input, shape index: {}]
  %s1 = inlined_call_operand.hbm [shape: f32[2,32], index: 1, kind: input, shape index: {}, may-alias: {1,5}]
  %s2 = inlined_call_operand.hbm [shape: f32[128,128], index: 2, kind: input, shape index: {}]
  %s3 = inlined_call_operand.hbm [shape: f32[2,128], index: 3, kind: input, shape index: {}]
  %s4 = inlined_call_operand.hbm [shape: f32[8,1,128], index: 4, kind: output, shape index: {0}]
  %s5 = inlined_call_operand.hbm [shape: f32[2,32], index: 5, kind: output, shape index: {1}, may-alias: {1,5}]
  %6 = xla_tuple %s4, %s5
  %s7 = sld [smem:[#allocation0]]
  $region73: #{_rnn_seq_call.1} parent=0
    _
  %s9 = ssub.s32 1, %s7
  %s10 = scalar_select 0, %s9, %s7
  $region1: #{_rnn_seq_call.1} parent=0
    #allocation2 [shape = 'u8[1024]{0}', space=vmem, size = 0x400, scoped, tag = 'input window, operand 1, single buffered']
    #allocation3 [shape = 's32[2]{0}', space=sflag, size = 0x8, scoped, tag = 'scoped memory for _rnn_seq_call.1']
    #allocation4 [shape = 's32[2]{0}', space=sflag, size = 0x8, scoped, tag = 'scoped memory for _rnn_seq_call.1']
    #allocation5 [shape = 'u8[65536]{0}', space=vmem, size = 0x10000, scoped, tag = 'input window, operand 2, single buffered']
    #allocation6 [shape = 's32[1]{0}', space=sflag, size = 0x4, scoped, tag = 'scoped memory for _rnn_seq_call.1']
    #allocation7 [shape = 'u8[1024]{0}', space=vmem, size = 0x400, scoped, tag = 'input window, operand 3, single buffered']
    #allocation8 [shape = 'u8[1024]{0}', space=vmem, size = 0x400, scoped, tag = 'output window, operand 0']
    #allocation9 [shape = 'u8[1024]{0}', space=vmem, size = 0x400, scoped, tag = 'output window, operand 1, single buffered']
    #allocation10 [shape = 's32[1]{0}', space=sflag, size = 0x4, scoped, tag = 'scoped memory for _rnn_seq_call.1']
    %11 = vsyncpa [#allocation3], 0
    %12 = vsyncpa [#allocation6], 0
    %13 = vsyncpa [#allocation4], 0
    %s14 = scalar_lea.sflag [#allocation4], 1
    %15 = vsyncpa %s14, 0
    %16 = vsyncpa [#allocation10], 0
    loop: start=0, step=1, limit=10
    $region2: #{_rnn_seq_call.1} parent=1 // loop_pre_header
      _
    $region3: #{_rnn_seq_call.1} parent=1 // loop_header
      %s18 = sphi 0, %s22
      %p19 = scmp.ge.s32.totalorder %s18, 10
      %s28 = sphi 0, %s30
      %s31 = sphi 0, %s28
      %s32 = sphi 0, %s31
      %s48 = sphi 0, %s32
      %s52 = sphi 0, %s52
      %s54 = sphi 0, %s52
      %s55 = sphi 0, %s54
      %s69 = sphi 0, %s55
      %s73 = sphi 0, %s73
      %s75 = sphi 0, %s73
      %s76 = sphi 0, %s75
      %s90 = sphi 0, %s76
      %s94 = sphi 0, %s94
      %s96 = sphi 0, %s94
      %s97 = sphi 0, %s96
      %s111 = sphi 0, %s97
      %s117 = sphi 0, %s119
      %s120 = sphi 0, %s117
      %s121 = sphi 0, %s120
      %s137 = sphi 0, %s121
      %s141 = sphi 0, %s141
      %s143 = sphi 0, %s141
      %s144 = sphi 0, %s143
      %s158 = sphi 0, %s144
    $region4: #{_rnn_seq_call.1} parent=1 // loop_header_branch
      %21 = sbr.rel (%p19) target = $region8
    $region5: #{_rnn_seq_call.1} parent=1 // loop_body
      %s23 = ssub.s32 %s18, 1
      %s24 = ssub.s32 %s18, 2
      %s25 = sadd.s32 %s18, 1
      %s26 = ssub.s32 %s18, %s25
      %p27 = scmp.eq.s32.totalorder %s26, 0
      %s29 = sadd.s32 %s28, 1
      %s30 = scalar_select %p27, %s28, %s29
      %p33 = pneg %p27
      %p34 = scmp.eq.s32.totalorder %s18, 7
      %p35 = por %p33, %p34
      %p36 = scmp.ne.s32.totalorder %s28, %s31
      %p37 = scmp.eq.s32.totalorder %s18, 0
      %p38 = por %p36, %p37
      %p39 = scmp.ne.s32.totalorder %s28, %s31
      %p40 = scmp.eq.s32.totalorder %s23, 7
      %p41 = por %p39, %p40
      %p42 = scmp.ne.s32.totalorder %s31, %s32
      %p43 = scmp.eq.s32.totalorder %s23, 0
      %p44 = por %p42, %p43
      %p45 = scmp.ne.s32.totalorder %s31, %s32
      %p46 = scmp.eq.s32.totalorder %s24, 7
      %p47 = por %p45, %p46
      %p49 = scmp.ne.s32.totalorder %s32, %s48
      %p50 = scmp.eq.s32.totalorder %s24, 0
      %p51 = por %p49, %p50
      %s53 = sadd.s32 %s52, 1
      %p56 = scmp.eq.s32.totalorder %s18, 7
      %p57 = scmp.ne.s32.totalorder %s52, %s54
      %p58 = scmp.eq.s32.totalorder %s18, 0
      %p59 = por %p57, %p58
      %p60 = scmp.ne.s32.totalorder %s52, %s54
      %p61 = scmp.eq.s32.totalorder %s23, 7
      %p62 = por %p60, %p61
      %p63 = scmp.ne.s32.totalorder %s54, %s55
      %p64 = scmp.eq.s32.totalorder %s23, 0
      %p65 = por %p63, %p64
      %p66 = scmp.ne.s32.totalorder %s54, %s55
      %p67 = scmp.eq.s32.totalorder %s24, 7
      %p68 = por %p66, %p67
      %p70 = scmp.ne.s32.totalorder %s55, %s69
      %p71 = scmp.eq.s32.totalorder %s24, 0
      %p72 = por %p70, %p71
      %s74 = sadd.s32 %s73, 1
      %p77 = scmp.eq.s32.totalorder %s18, 7
      %p78 = scmp.ne.s32.totalorder %s73, %s75
      %p79 = scmp.eq.s32.totalorder %s18, 0
      %p80 = por %p78, %p79
      %p81 = scmp.ne.s32.totalorder %s73, %s75
      %p82 = scmp.eq.s32.totalorder %s23, 7
      %p83 = por %p81, %p82
      %p84 = scmp.ne.s32.totalorder %s75, %s76
      %p85 = scmp.eq.s32.totalorder %s23, 0
      %p86 = por %p84, %p85
      %p87 = scmp.ne.s32.totalorder %s75, %s76
      %p88 = scmp.eq.s32.totalorder %s24, 7
      %p89 = por %p87, %p88
      %p91 = scmp.ne.s32.totalorder %s76, %s90
      %p92 = scmp.eq.s32.totalorder %s24, 0
      %p93 = por %p91, %p92
      %s95 = sadd.s32 %s94, 1
      %p98 = scmp.eq.s32.totalorder %s18, 7
      %p99 = scmp.ne.s32.totalorder %s94, %s96
      %p100 = scmp.eq.s32.totalorder %s18, 0
      %p101 = por %p99, %p100
      %p102 = scmp.ne.s32.totalorder %s94, %s96
      %p103 = scmp.eq.s32.totalorder %s23, 7
      %p104 = por %p102, %p103
      %p105 = scmp.ne.s32.totalorder %s96, %s97
      %p106 = scmp.eq.s32.totalorder %s23, 0
      %p107 = por %p105, %p106
      %p108 = scmp.ne.s32.totalorder %s96, %s97
      %p109 = scmp.eq.s32.totalorder %s24, 7
      %p110 = por %p108, %p109
      %p112 = scmp.ne.s32.totalorder %s97, %s111
      %p113 = scmp.eq.s32.totalorder %s24, 0
      %p114 = por %p112, %p113
      %s115 = ssub.s32 %s18, %s25
      %p116 = scmp.eq.s32.totalorder %s115, 0
      %s118 = sadd.s32 %s117, 1
      %s119 = scalar_select %p116, %s117, %s118
      %p122 = pneg %p116
      %p123 = scmp.eq.s32.totalorder %s18, 7
      %p124 = por %p122, %p123
      %p125 = scmp.ne.s32.totalorder %s117, %s120
      %p126 = scmp.eq.s32.totalorder %s18, 0
      %p127 = por %p125, %p126
      %p128 = scmp.ne.s32.totalorder %s117, %s120
      %p129 = scmp.eq.s32.totalorder %s23, 7
      %p130 = por %p128, %p129
      %p131 = scmp.ne.s32.totalorder %s120, %s121
      %p132 = scmp.eq.s32.totalorder %s23, 0
      %p133 = por %p131, %p132
      %p134 = scmp.ne.s32.totalorder %s120, %s121
      %p135 = scmp.eq.s32.totalorder %s24, 7
      %p136 = por %p134, %p135
      %p138 = scmp.ne.s32.totalorder %s121, %s137
      %p139 = scmp.eq.s32.totalorder %s24, 0
      %p140 = por %p138, %p139
      %s142 = sadd.s32 %s141, 1
      %p145 = scmp.eq.s32.totalorder %s18, 7
      %p146 = scmp.ne.s32.totalorder %s141, %s143
      %p147 = scmp.eq.s32.totalorder %s18, 0
      %p148 = por %p146, %p147
      %p149 = scmp.ne.s32.totalorder %s141, %s143
      %p150 = scmp.eq.s32.totalorder %s23, 7
      %p151 = por %p149, %p150
      %p152 = scmp.ne.s32.totalorder %s143, %s144
      %p153 = scmp.eq.s32.totalorder %s23, 0
      %p154 = por %p152, %p153
      %p155 = scmp.ne.s32.totalorder %s143, %s144
      %p156 = scmp.eq.s32.totalorder %s24, 7
      %p157 = por %p155, %p156
      %p159 = scmp.ne.s32.totalorder %s144, %s158
      %p160 = scmp.eq.s32.totalorder %s24, 0
      %p161 = por %p159, %p160
      %p162 = scmp.le.s32.totalorder 1, %s18
      %p163 = scmp.lt.s32.totalorder %s18, 9
      %p164 = pnand %p162, %p163
      %p165 = pneg %p164
      // Predicated region
      $region9: #{_rnn_seq_call.1} parent=5 // pred_check
        _
      $region10: #{_rnn_seq_call.1} parent=5 // pred_check_branch
        %167 = sbr.rel (%p164) target = $region12
      $region11: #{_rnn_seq_call.1} parent=5 // pred_region
        %s168 = ssub.s32 %s18, 1
        // Predicated region
        $region13: #{_rnn_seq_call.1} parent=11 // pred_check
          %p169 = pneg %p65
        $region14: #{_rnn_seq_call.1} parent=11 // pred_check_branch
          %171 = sbr.rel (%p169) target = $region16
        $region15: #{_rnn_seq_call.1} parent=11 // pred_region
          %s173 = ssub.s32 32, 32
          %174 = vsyncadd [#allocation3], %s173
          %s176 = sshll.u32 [#allocation2], 4
          %s177 = int_to_ptr.vmem [resolvable:$true] %s176
          %179 = dma.hbm_to_vmem [thread:$0]  %s1, 32, %s177, [#allocation3]
        $region16: #{_rnn_seq_call.1} parent=11 // pred_fallthru
          _
        // Predicated region
        $region17: #{_rnn_seq_call.1} parent=11 // pred_check
          %p180 = pneg %p86
        $region18: #{_rnn_seq_call.1} parent=11 // pred_check_branch
          %182 = sbr.rel (%p180) target = $region20
        $region19: #{_rnn_seq_call.1} parent=11 // pred_region
          %s184 = ssub.s32 2048, 2048
          %185 = vsyncadd [#allocation6], %s184
          %s186 = sshll.u32 [#allocation5], 4
          %s187 = int_to_ptr.vmem [resolvable:$true] %s186
          %192 = dma.hbm_to_vmem [thread:$0]  %s2, 2048, %s187, [#allocation6], 128, 128, 8
        $region20: #{_rnn_seq_call.1} parent=11 // pred_fallthru
          _
        // Predicated region
        $region21: #{_rnn_seq_call.1} parent=11 // pred_check
          %p193 = pneg %p107
        $region22: #{_rnn_seq_call.1} parent=11 // pred_check_branch
          %195 = sbr.rel (%p193) target = $region24
        $region23: #{_rnn_seq_call.1} parent=11 // pred_region
          %s197 = ssub.s32 32, 32
          %198 = vsyncadd [#allocation6], %s197
          %s200 = sshll.u32 [#allocation7], 4
          %s201 = int_to_ptr.vmem [resolvable:$true] %s200
          %203 = dma.hbm_to_vmem [thread:$0]  %s3, 32, %s201, [#allocation6]
        $region24: #{_rnn_seq_call.1} parent=11 // pred_fallthru
          _
      $region12: #{_rnn_seq_call.1} parent=5 // pred_fallthru
        _
      %p204 = scmp.lt.s32.totalorder %s18, 8
      // Predicated region
      $region25: #{_rnn_seq_call.1} parent=5 // pred_check
        %p205 = pneg %p204
      $region26: #{_rnn_seq_call.1} parent=5 // pred_check_branch
        %207 = sbr.rel (%p205) target = $region28
      $region27: #{_rnn_seq_call.1} parent=5 // pred_region
        // Predicated region
        $region29: #{_rnn_seq_call.1} parent=27 // pred_check
          %p208 = pneg %p38
        $region30: #{_rnn_seq_call.1} parent=27 // pred_check_branch
          %210 = sbr.rel (%p208) target = $region32
        $region31: #{_rnn_seq_call.1} parent=27 // pred_region
          %p211 = scmp.lt.s32.totalorder %s18, 7
          %s212 = scalar_select %p211, %s18, 7
          %s213 = scalar_lea.vmem %s0, %s212
        $region32: #{_rnn_seq_call.1} parent=27 // pred_fallthru
          _
      $region28: #{_rnn_seq_call.1} parent=5 // pred_fallthru
        _
      %p214 = scmp.le.s32.totalorder 1, %s18
      %p215 = scmp.lt.s32.totalorder %s18, 9
      %p216 = pnand %p214, %p215
      %p217 = pneg %p216
      // Predicated region
      $region33: #{_rnn_seq_call.1} parent=5 // pred_check
        _
      $region34: #{_rnn_seq_call.1} parent=5 // pred_check_branch
        %219 = sbr.rel (%p216) target = $region36
      $region35: #{_rnn_seq_call.1} parent=5 // pred_region
        %s220 = ssub.s32 %s18, 1
        // Predicated region
        $region37: #{_rnn_seq_call.1} parent=35 // pred_check
          %p221 = pneg %p65
        $region38: #{_rnn_seq_call.1} parent=35 // pred_check_branch
          %223 = sbr.rel (%p221) target = $region40
        $region39: #{_rnn_seq_call.1} parent=35 // pred_region
          %224 = dma.done [#allocation3], 32
        $region40: #{_rnn_seq_call.1} parent=35 // pred_fallthru
          _
        // Predicated region
        $region41: #{_rnn_seq_call.1} parent=35 // pred_check
          %p225 = pneg %p86
        $region42: #{_rnn_seq_call.1} parent=35 // pred_check_branch
          %227 = sbr.rel (%p225) target = $region44
        $region43: #{_rnn_seq_call.1} parent=35 // pred_region
          %228 = dma.done [#allocation6], 2048
        $region44: #{_rnn_seq_call.1} parent=35 // pred_fallthru
          _
        // Predicated region
        $region45: #{_rnn_seq_call.1} parent=35 // pred_check
          %p229 = pneg %p107
        $region46: #{_rnn_seq_call.1} parent=35 // pred_check_branch
          %231 = sbr.rel (%p229) target = $region48
        $region47: #{_rnn_seq_call.1} parent=35 // pred_region
          %232 = dma.done [#allocation6], 32
        $region48: #{_rnn_seq_call.1} parent=35 // pred_fallthru
          _
        %p233 = scmp.lt.s32.totalorder %s23, 7
        %s234 = scalar_select %p233, %s23, 7
        %s235 = scalar_lea.vmem %s0, %s234
        %p236 = pneg %p44
        %p237 = pneg %p41
        %p238 = pneg %p65
        %p239 = pneg %p62
        %p240 = pneg %p86
        %p241 = pneg %p83
        %p242 = pneg %p107
        %p243 = pneg %p104
        %p244 = pneg %p133
        %p245 = pneg %p130
        %s246 = sand.u32 %s120, 1
        %s247 = scalar_lea.sflag [#allocation4], %s246
        %s248 = sand.u32 %s120, 1
        %s249 = scalar_lea.vmem [#allocation8], %s248
        %p250 = pneg %p154
        %p251 = pneg %p151
        %p252 = scmp.lt.s32.totalorder %s23, 7
        %s253 = scalar_select %p252, %s23, 7
        %s254 = scalar_lea.vmem %s0, %s253
        %p255 = scmp.eq.s32.totalorder %s23, 0
        // Predicated region
        $region49: #{_rnn_seq_call.1} parent=35 // pred_check
          %p256 = pneg %p255
        $region50: #{_rnn_seq_call.1} parent=35 // pred_check_branch
          %258 = sbr.rel (%p256) target = $region52
        $region51: #{_rnn_seq_call.1} parent=35 // pred_region
          %v259 = vld [vmem:[#allocation2] sm:$0x3]
          %vm260 = vcmask 254976
          %261 = vst.msk [vmem:[#allocation9] sm:$0x3] %vm260, %v259
        $region52: #{_rnn_seq_call.1} parent=35 // pred_fallthru
          _
        %v262 = vld [vmem:[#allocation9] sm:$0x1]
        %v263 = vld [vmem:[#allocation9 + $0x1] sm:$0x1]
        %v264 = vld [vmem:[%s254] sm:$0x1]
        %v265 = vld [vmem:[#allocation5] sm:$0xff]
        %v266 = vld [vmem:[#allocation5 + $0x8] sm:$0xff]
        %v267 = vld [vmem:[#allocation5 + $0x10] sm:$0xff]
        %v268 = vld [vmem:[#allocation5 + $0x18] sm:$0xff]
        %v269 = vld [vmem:[#allocation5 + $0x20] sm:$0xff]
        %v270 = vld [vmem:[#allocation5 + $0x28] sm:$0xff]
        %v271 = vld [vmem:[#allocation5 + $0x30] sm:$0xff]
        %v272 = vld [vmem:[#allocation5 + $0x38] sm:$0xff]
        %v273 = vld [vmem:[#allocation5 + $0x40] sm:$0xff]
        %v274 = vld [vmem:[#allocation5 + $0x48] sm:$0xff]
        %v275 = vld [vmem:[#allocation5 + $0x50] sm:$0xff]
        %v276 = vld [vmem:[#allocation5 + $0x58] sm:$0xff]
        %vm277 = vcmask 261120
        %v279 = vsel %vm277, %v262, 0
        %281 = vmatprep.subr.mxu0 0.0
        %282 = vmatpush1.msra.mxu0 0.0
        %283 = vmatprep.subr.mxu0 0.0
        %284 = vmatpush1.msra.mxu0 0.0
        %285 = vmatprep.subr.mxu0 0.0
        %286 = vmatpush1.msra.mxu0 0.0
        %287 = vmatprep.subr.mxu0 0.0
        %288 = vmatpush1.msra.mxu0 0.0
        %289 = vmatprep.subr.mxu0 0.0
        %290 = vmatpush1.msra.mxu0 0.0
        %291 = vmatprep.subr.mxu0 0.0
        %292 = vmatpush1.msra.mxu0 0.0
        %293 = vmatprep.subr.mxu0 0.0
        %294 = vmatpush1.msra.mxu0 0.0
        %295 = vmatprep.subr.mxu0 0.0
        %296 = vmatpush1.msra.mxu0 0.0
        %297 = vmatprep.subr.mxu0 0.0
        %298 = vmatpush1.msra.mxu0 0.0
        %299 = vmatprep.subr.mxu0 0.0
        %300 = vmatpush1.msra.mxu0 0.0
        %301 = vmatprep.subr.mxu0 0.0
        %302 = vmatpush1.msra.mxu0 0.0
        %303 = vmatprep.subr.mxu0 0.0
        %304 = vmatpush1.msra.mxu0 0.0
        %305 = vmatprep.subr.mxu0 0.0
        %306 = vmatpush1.msra.mxu0 %v276
        %307 = vmatprep.subr.mxu0 0.0
        %308 = vmatpush1.msra.mxu0 %v275
        %309 = vmatprep.subr.mxu0 0.0
        %310 = vmatpush1.msra.mxu0 %v274
        %311 = vmatprep.subr.mxu0 0.0
        %312 = vmatpush1.msra.mxu0 %v273
        %313 = vmatprep.subr.mxu0 0.0
        %314 = vmatpush2.msra.mxu0 0.0
        %315 = vmatprep.subr.mxu0 0.0
        %316 = vmatpush2.msra.mxu0 0.0
        %317 = vmatprep.subr.mxu0 0.0
        %318 = vmatpush2.msra.mxu0 0.0
        %319 = vmatprep.subr.mxu0 0.0
        %320 = vmatpush2.msra.mxu0 0.0
        %321 = vmatprep.subr.mxu0 0.0
        %322 = vmatpush2.msra.mxu0 0.0
        %323 = vmatprep.subr.mxu0 0.0
        %324 = vmatpush2.msra.mxu0 0.0
        %325 = vmatprep.subr.mxu0 0.0
        %326 = vmatpush2.msra.mxu0 0.0
        %327 = vmatprep.subr.mxu0 0.0
        %328 = vmatpush2.msra.mxu0 0.0
        %329 = vmatprep.subr.mxu0 0.0
        %330 = vmatpush2.msra.mxu0 0.0
        %331 = vmatprep.subr.mxu0 0.0
        %332 = vmatpush2.msra.mxu0 0.0
        %333 = vmatprep.subr.mxu0 0.0
        %334 = vmatpush2.msra.mxu0 0.0
        %335 = vmatprep.subr.mxu0 0.0
        %336 = vmatpush2.msra.mxu0 0.0
        %337 = vmatprep.subr.mxu0 0.0
        %338 = vmatpush2.msra.mxu0 0.0
        %339 = vmatprep.subr.mxu0 0.0
        %340 = vmatpush2.msra.mxu0 0.0
        %341 = vmatprep.subr.mxu0 0.0
        %342 = vmatpush2.msra.mxu0 0.0
        %343 = vmatprep.subr.mxu0 0.0
        %344 = vmatpush2.msra.mxu0 0.0
        %345 = vmatprep.mubr.f32.mxu0 0.0
        %346 = vmatmul.mubr.f32.gmra.mxu0 %v279
        %v347 = vpop.f32.mrf.mxu0
        %v348 = vadd.f32 0.0, %v347
        %v349 = vpop.f32.mrf.mxu0
        %350 = vdwg.mxu0
        %vm351 = vcmask 523264
        %v353 = vsel %vm351, %v264, 0
        %355 = vmatprep.subr.mxu0 0.0
        %356 = vmatpush1.msra.mxu0 0.0
        %357 = vmatprep.subr.mxu0 0.0
        %358 = vmatpush1.msra.mxu0 0.0
        %359 = vmatprep.subr.mxu0 0.0
        %360 = vmatpush1.msra.mxu0 0.0
        %361 = vmatprep.subr.mxu0 0.0
        %362 = vmatpush1.msra.mxu0 0.0
        %363 = vmatprep.subr.mxu0 0.0
        %364 = vmatpush1.msra.mxu0 0.0
        %365 = vmatprep.subr.mxu0 0.0
        %366 = vmatpush1.msra.mxu0 0.0
        %367 = vmatprep.subr.mxu0 0.0
        %368 = vmatpush1.msra.mxu0 0.0
        %369 = vmatprep.subr.mxu0 0.0
        %370 = vmatpush1.msra.mxu0 0.0
        %371 = vmatprep.subr.mxu0 0.0
        %372 = vmatpush1.msra.mxu0 %v272
        %373 = vmatprep.subr.mxu0 0.0
        %374 = vmatpush1.msra.mxu0 %v271
        %375 = vmatprep.subr.mxu0 0.0
        %376 = vmatpush1.msra.mxu0 %v270
        %377 = vmatprep.subr.mxu0 0.0
        %378 = vmatpush1.msra.mxu0 %v269
        %379 = vmatprep.subr.mxu0 0.0
        %380 = vmatpush1.msra.mxu0 %v268
        %381 = vmatprep.subr.mxu0 0.0
        %382 = vmatpush1.msra.mxu0 %v267
        %383 = vmatprep.subr.mxu0 0.0
        %384 = vmatpush1.msra.mxu0 %v266
        %385 = vmatprep.subr.mxu0 0.0
        %386 = vmatpush1.msra.mxu0 %v265
        %387 = vmatprep.subr.mxu0 0.0
        %388 = vmatpush2.msra.mxu0 0.0
        %389 = vmatprep.subr.mxu0 0.0
        %390 = vmatpush2.msra.mxu0 0.0
        %391 = vmatprep.subr.mxu0 0.0
        %392 = vmatpush2.msra.mxu0 0.0
        %393 = vmatprep.subr.mxu0 0.0
        %394 = vmatpush2.msra.mxu0 0.0
        %395 = vmatprep.subr.mxu0 0.0
        %396 = vmatpush2.msra.mxu0 0.0
        %397 = vmatprep.subr.mxu0 0.0
        %398 = vmatpush2.msra.mxu0 0.0
        %399 = vmatprep.subr.mxu0 0.0
        %400 = vmatpush2.msra.mxu0 0.0
        %401 = vmatprep.subr.mxu0 0.0
        %402 = vmatpush2.msra.mxu0 0.0
        %403 = vmatprep.subr.mxu0 0.0
        %404 = vmatpush2.msra.mxu0 0.0
        %405 = vmatprep.subr.mxu0 0.0
        %406 = vmatpush2.msra.mxu0 0.0
        %407 = vmatprep.subr.mxu0 0.0
        %408 = vmatpush2.msra.mxu0 0.0
        %409 = vmatprep.subr.mxu0 0.0
        %410 = vmatpush2.msra.mxu0 0.0
        %411 = vmatprep.subr.mxu0 0.0
        %412 = vmatpush2.msra.mxu0 0.0
        %413 = vmatprep.subr.mxu0 0.0
        %414 = vmatpush2.msra.mxu0 0.0
        %415 = vmatprep.subr.mxu0 0.0
        %416 = vmatpush2.msra.mxu0 0.0
        %417 = vmatprep.subr.mxu0 0.0
        %418 = vmatpush2.msra.mxu0 0.0
        %419 = vmatprep.mubr.f32.mxu0 0.0
        %420 = vmatmul.mubr.f32.gmra.mxu0 %v353
        %v421 = vpop.f32.mrf.mxu0
        %v422 = vadd.f32 %v348, %v421
        %v423 = vpop.f32.mrf.mxu0
        %424 = vdwg.mxu0
        %v425 = vld [vmem:[#allocation7] sm:$0x1]
        %v426 = vadd.f32 %v422, %v425
        %v427 = vxor.u32 %v426, 2147483648
        %v428 = vmul.f32 %v427, 1.442695
        %v429 = vpow.pop %v428
        %v430 = vadd.f32 %v429, 1.0
        %v431 = vrcp.pop %v430
        %v432 = vmul.f32 1.0, %v431
        %v433 = vtanh.pop %v426
        %435 = vrot.lane.b32.xlu0 %v263, 32
        %v436 = vpop.permute.xlu0 %435
        %v438 = vmul.f32 %v432, %v436
        %440 = vrot.lane.b32.xlu0 %v433, 64
        %v441 = vpop.permute.xlu0 %440
        %v443 = vmul.f32 %v432, %v441
        %445 = vrot.lane.b32.xlu0 %v443, 32
        %v446 = vpop.permute.xlu0 %445
        %v448 = vadd.f32 %v438, %v446
        %v449 = vtanh.pop %v448
        %451 = vrot.lane.b32.xlu0 %v449, 64
        %v452 = vpop.permute.xlu0 %451
        %v454 = vmul.f32 %v432, %v452
        %v455 = vld [vmem:[#allocation5 + $0x60] sm:$0xff]
        %v456 = vld [vmem:[#allocation5 + $0x68] sm:$0xff]
        %v457 = vld [vmem:[#allocation5 + $0x70] sm:$0xff]
        %v458 = vld [vmem:[#allocation5 + $0x78] sm:$0xff]
        %v459 = vld [vmem:[#allocation7 + $0x1] sm:$0x1]
        %461 = vrot.lane.b32.xlu0 %v454, 32
        %v462 = vpop.permute.xlu0 %461
        %v463 = vsel %vm277, %v462, 0
        %465 = vmatprep.subr.mxu0 0.0
        %466 = vmatpush1.msra.mxu0 0.0
        %467 = vmatprep.subr.mxu0 0.0
        %468 = vmatpush1.msra.mxu0 0.0
        %469 = vmatprep.subr.mxu0 0.0
        %470 = vmatpush1.msra.mxu0 0.0
        %471 = vmatprep.subr.mxu0 0.0
        %472 = vmatpush1.msra.mxu0 0.0
        %473 = vmatprep.subr.mxu0 0.0
        %474 = vmatpush1.msra.mxu0 0.0
        %475 = vmatprep.subr.mxu0 0.0
        %476 = vmatpush1.msra.mxu0 0.0
        %477 = vmatprep.subr.mxu0 0.0
        %478 = vmatpush1.msra.mxu0 0.0
        %479 = vmatprep.subr.mxu0 0.0
        %480 = vmatpush1.msra.mxu0 0.0
        %481 = vmatprep.subr.mxu0 0.0
        %482 = vmatpush1.msra.mxu0 0.0
        %483 = vmatprep.subr.mxu0 0.0
        %484 = vmatpush1.msra.mxu0 0.0
        %485 = vmatprep.subr.mxu0 0.0
        %486 = vmatpush1.msra.mxu0 0.0
        %487 = vmatprep.subr.mxu0 0.0
        %488 = vmatpush1.msra.mxu0 0.0
        %489 = vmatprep.subr.mxu0 0.0
        %490 = vmatpush1.msra.mxu0 %v458
        %491 = vmatprep.subr.mxu0 0.0
        %492 = vmatpush1.msra.mxu0 %v457
        %493 = vmatprep.subr.mxu0 0.0
        %494 = vmatpush1.msra.mxu0 %v456
        %495 = vmatprep.subr.mxu0 0.0
        %496 = vmatpush1.msra.mxu0 %v455
        %497 = vmatprep.subr.mxu0 0.0
        %498 = vmatpush2.msra.mxu0 0.0
        %499 = vmatprep.subr.mxu0 0.0
        %500 = vmatpush2.msra.mxu0 0.0
        %501 = vmatprep.subr.mxu0 0.0
        %502 = vmatpush2.msra.mxu0 0.0
        %503 = vmatprep.subr.mxu0 0.0
        %504 = vmatpush2.msra.mxu0 0.0
        %505 = vmatprep.subr.mxu0 0.0
        %506 = vmatpush2.msra.mxu0 0.0
        %507 = vmatprep.subr.mxu0 0.0
        %508 = vmatpush2.msra.mxu0 0.0
        %509 = vmatprep.subr.mxu0 0.0
        %510 = vmatpush2.msra.mxu0 0.0
        %511 = vmatprep.subr.mxu0 0.0
        %512 = vmatpush2.msra.mxu0 0.0
        %513 = vmatprep.subr.mxu0 0.0
        %514 = vmatpush2.msra.mxu0 0.0
        %515 = vmatprep.subr.mxu0 0.0
        %516 = vmatpush2.msra.mxu0 0.0
        %517 = vmatprep.subr.mxu0 0.0
        %518 = vmatpush2.msra.mxu0 0.0
        %519 = vmatprep.subr.mxu0 0.0
        %520 = vmatpush2.msra.mxu0 0.0
        %521 = vmatprep.subr.mxu0 0.0
        %522 = vmatpush2.msra.mxu0 0.0
        %523 = vmatprep.subr.mxu0 0.0
        %524 = vmatpush2.msra.mxu0 0.0
        %525 = vmatprep.subr.mxu0 0.0
        %526 = vmatpush2.msra.mxu0 0.0
        %527 = vmatprep.subr.mxu0 0.0
        %528 = vmatpush2.msra.mxu0 0.0
        %529 = vmatprep.mubr.f32.mxu0 0.0
        %530 = vmatmul.mubr.f32.gmra.mxu0 %v463
        %v531 = vpop.f32.mrf.mxu0
        %v532 = vadd.f32 %v459, %v531
        %v533 = vpop.f32.mrf.mxu0
        %534 = vdwg.mxu0
        %535 = vst [vmem:[%s249] sm:$0x1] %v532
        %vm537 = vcmask 253952
        %538 = vst.msk [vmem:[#allocation9] sm:$0x1] %vm537, %v462
        %540 = vrot.lane.b32.xlu0 %v448, 96
        %v541 = vpop.permute.xlu0 %540
        %543 = vst.msk [vmem:[#allocation9 + $0x1] sm:$0x1] %vm537, %v541
        %s544 = sand.u32 %s120, 1
        %s545 = scalar_lea.sflag [#allocation4], %s544
        %s546 = sand.u32 %s120, 1
        %s547 = scalar_lea.vmem [#allocation8], %s546
        // Predicated region
        $region53: #{_rnn_seq_call.1} parent=35 // pred_check
          %p548 = pneg %p130
        $region54: #{_rnn_seq_call.1} parent=35 // pred_check_branch
          %550 = sbr.rel (%p548) target = $region56
        $region55: #{_rnn_seq_call.1} parent=35 // pred_region
          %s552 = ssub.s32 16, 16
          %553 = vsyncadd %s545, %s552
          %s554 = smul.addr %s23, 16
          %s555 = scalar_lea.hbm %s4, %s554
          %s557 = sshll.u32 %s547, 4
          %s558 = int_to_ptr.vmem [resolvable:$true] %s557
          %560 = dma.vmem_to_hbm [thread:$0]  %s558, 16, %s555, %s545
        $region56: #{_rnn_seq_call.1} parent=35 // pred_fallthru
          _
        // Predicated region
        $region57: #{_rnn_seq_call.1} parent=35 // pred_check
          %p561 = pneg %p151
        $region58: #{_rnn_seq_call.1} parent=35 // pred_check_branch
          %563 = sbr.rel (%p561) target = $region60
        $region59: #{_rnn_seq_call.1} parent=35 // pred_region
          %s565 = ssub.s32 32, 32
          %566 = vsyncadd [#allocation10], %s565
          %s568 = sshll.u32 [#allocation9], 4
          %s569 = int_to_ptr.vmem [resolvable:$true] %s568
          %571 = dma.vmem_to_hbm [thread:$0]  %s569, 32, %s5, [#allocation10]
        $region60: #{_rnn_seq_call.1} parent=35 // pred_fallthru
          _
        // Predicated region
        $region61: #{_rnn_seq_call.1} parent=35 // pred_check
          %p572 = pneg %p151
        $region62: #{_rnn_seq_call.1} parent=35 // pred_check_branch
          %574 = sbr.rel (%p572) target = $region64
        $region63: #{_rnn_seq_call.1} parent=35 // pred_region
          %575 = dma.done [#allocation10], 32
        $region64: #{_rnn_seq_call.1} parent=35 // pred_fallthru
          _
      $region36: #{_rnn_seq_call.1} parent=5 // pred_fallthru
        _
      %p576 = scmp.le.s32.totalorder 2, %s18
      // Predicated region
      $region65: #{_rnn_seq_call.1} parent=5 // pred_check
        %p577 = pneg %p576
      $region66: #{_rnn_seq_call.1} parent=5 // pred_check_branch
        %579 = sbr.rel (%p577) target = $region68
      $region67: #{_rnn_seq_call.1} parent=5 // pred_region
        %s580 = ssub.s32 %s18, 2
        // Predicated region
        $region69: #{_rnn_seq_call.1} parent=67 // pred_check
          %p581 = pneg %p136
        $region70: #{_rnn_seq_call.1} parent=67 // pred_check_branch
          %583 = sbr.rel (%p581) target = $region72
        $region71: #{_rnn_seq_call.1} parent=67 // pred_region
          %s584 = sand.u32 %s121, 1
          %s585 = scalar_lea.sflag [#allocation4], %s584
          %s586 = sand.u32 %s121, 1
          %s587 = scalar_lea.vmem [#allocation8], %s586
          %588 = dma.done %s585, 16
        $region72: #{_rnn_seq_call.1} parent=67 // pred_fallthru
          _
      $region68: #{_rnn_seq_call.1} parent=5 // pred_fallthru
        _
    $region6: #{_rnn_seq_call.1} parent=1 // loop_footer
      %s22 = sadd.s32 1, %s18
    $region7: #{_rnn_seq_call.1} parent=1 // loop_footer_branch
      %17 = sbr.rel target = $region3
    $region8: #{_rnn_seq_call.1} parent=1 // loop_exit
      _
    %589 = vsyncpa [#allocation3], 1
    %s590 = scalar_lea.sflag [#allocation3], 1
    %591 = vsyncpa %s590, 1
    %592 = vsyncpa [#allocation6], 1
    %593 = vsyncpa [#allocation4], 1
    %s594 = scalar_lea.sflag [#allocation4], 1
    %595 = vsyncpa %s594, 1
    %596 = vsyncpa [#allocation10], 1

</llo_original>
